<compile_context>
chip_gen: v7x
topology: tpu7x:2x2x1
jax: 0.10.0
libtpu: 0.0.40
codegen_flags: <defaults>
</compile_context>

<pallas_src>
import functools
import math

import jax
import jax.numpy as jnp
from jax.experimental import pallas as pl
from jax.experimental.pallas import tpu as pltpu


def _lowest_value(dtype):
    """Identity element for max over `dtype`."""
    dtype = jnp.dtype(dtype)
    if jnp.issubdtype(dtype, jnp.floating):
        return float("-inf")
    if dtype == jnp.bool_:
        return False
    return int(jnp.iinfo(dtype).min)


def _round_up(n, m):
    return ((n + m - 1) // m) * m


def _cdiv(a, b):
    return -(-a // b)


def _sublane_pack(dtype):
    """Minimum sublane tile: 8 for 4-byte, 16 for 2-byte, 32 for 1-byte dtypes."""
    itemsize = jnp.dtype(dtype).itemsize
    return max(8, 32 // max(itemsize, 1))


def _choose_tiles(B, S, F, dtype, target_bytes):
    """Pick (tb, ts, tf) batch / sequence / feature block sizes.

    Accounts for lane padding (minor dim rounded to 128 in VMEM), rounds to the
    dtype's minimum sublane pack, keeps >=2 sequence steps for DMA/compute
    overlap when the data volume warrants it, and keeps >=2 steps on a parallel
    (batch or feature) axis so both v7x TensorCores stream.
    """
    itemsize = jnp.dtype(dtype).itemsize
    pack = _sublane_pack(dtype)
    f_pad = _round_up(F, 128)                 # physical lane width in VMEM
    row_bytes = f_pad * itemsize

    # --- batch tile ------------------------------------------------------
    if B <= pack:
        tb_max = B                            # one full-B block (full-dim ok)
    else:
        tb_max = ((B - 1) // pack) * pack     # largest pack multiple < B -> >=2 blocks
    tb = min(tb_max, pack)

    # --- sequence tile (fill the byte budget, padded accounting) ----------
    ts = max(1, target_bytes // (tb * row_bytes))
    if ts >= S:
        # Whole sequence fits; spend leftover budget packing more batch rows.
        tb_budget = max(1, target_bytes // (max(S, 1) * row_bytes))
        if tb_budget >= tb_max:
            tb = tb_max
        elif tb_budget >= pack:
            tb = min(tb_max, (tb_budget // pack) * pack)
        ts = S
        # Keep >=2 sequence steps so tile i+1's DMA overlaps reducing tile i
        # (only when the per-block data is big enough for pipelining to matter).
        if S >= 2 * pack and tb * S * row_bytes > (512 << 10):
            ts = _round_up(_cdiv(S, 2), pack)
    else:
        ts = min(S, max(pack, (ts // pack) * pack))

    # --- feature tile ------------------------------------------------------
    tf = F
    if _cdiv(B, tb) == 1 and F >= 256 and F % 256 == 0:
        # No batch parallelism available: split features across the two v7x
        # TensorCores instead (each half stays a 128-lane multiple).
        tf = F // 2
    return tb, ts, tf


def _global_max_pool_kernel(x_ref, o_ref, *, seq_len, seq_tile, lowest):
    # x_ref: (tb, ts, tf) VMEM tile.  o_ref: (tb, tf) output block, resident
    # across the trailing ("arbitrary") sequence grid axis -> accumulator.
    s = pl.program_id(2)

    @pl.when(s == 0)
    def _init():
        o_ref[...] = jnp.full(o_ref.shape, lowest, dtype=o_ref.dtype)

    def _reduce_tile(x):
        # Per-tile sublane reduce (XLU); elementwise accumulation across tiles (VALU).
        o_ref[...] = jnp.maximum(o_ref[...], jnp.max(x, axis=1))

    if seq_len % seq_tile != 0:
        # Only the last sequence tile has out-of-range (padded) rows: mask it
        # there and keep the cheap unmasked path for every other tile.
        last = pl.num_programs(2) - 1

        @pl.when(s == last)
        def _masked():
            x = x_ref[...]
            valid = seq_len - s * seq_tile
            row = jax.lax.broadcasted_iota(jnp.int32, x.shape, dimension=1)
            _reduce_tile(jnp.where(row < valid, x,
                                   jnp.asarray(lowest, dtype=x.dtype)))

        @pl.when(s != last)
        def _plain():
            _reduce_tile(x_ref[...])
    else:
        _reduce_tile(x_ref[...])


def _pooled_call(x, tb, ts, tf, lowest, vmem_limit_bytes):
    B, S, F = x.shape
    kernel = functools.partial(
        _global_max_pool_kernel, seq_len=S, seq_tile=ts, lowest=lowest)
    grid = (pl.cdiv(B, tb), pl.cdiv(F, tf), pl.cdiv(S, ts))  # reduction axis last
    return pl.pallas_call(
        kernel,
        out_shape=jax.ShapeDtypeStruct((B, F), x.dtype),
        grid=grid,
        in_specs=[pl.BlockSpec((tb, ts, tf), lambda b, f, s: (b, s, f))],
        out_specs=pl.BlockSpec((tb, tf), lambda b, f, s: (b, f)),
        compiler_params=pltpu.CompilerParams(
            dimension_semantics=("parallel", "parallel", "arbitrary"),
            vmem_limit_bytes=vmem_limit_bytes,
        ),
    )(x)


def global_max_pooling(x, *, target_tile_bytes=8 << 20, vmem_limit_bytes=48 << 20):
    """x: (B, S, F) -> (B, F), max over the temporal dim (dim=1)."""
    B, S, F = x.shape
    lowest = _lowest_value(x.dtype)

    # Lane-density fold: present a 128-multiple minor dim to the kernel when
    # F is narrow.  (B, S, F) -> (B, S/k, k*F) is a free row-major view; the
    # leftover (B, k, F) max is a tiny op done outside the kernel.
    fold = 1
    if F % 128 != 0:
        k0 = 128 // math.gcd(F, 128)
        if k0 > 1 and S % k0 == 0:
            fold = k0
    xk = x.reshape(B, S // fold, fold * F) if fold > 1 else x
    Bk, Sk, Fk = xk.shape

    tb, ts, tf = _choose_tiles(Bk, Sk, Fk, xk.dtype, target_tile_bytes)
    out_k = _pooled_call(xk, tb, ts, tf, lowest, vmem_limit_bytes)

    if fold > 1:
        out_k = jnp.max(out_k.reshape(B, fold, F), axis=1)
    return out_k


if __name__ == "__main__":
    # Case 1: the module's nominal small shape (batch=2, seq=8, hidden=32).
    # Exercises the lane-density fold ((2,8,32) -> (2,2,128)).
    key = jax.random.PRNGKey(0)
    B, S, F = 2, 8, 32
    x = jax.random.normal(key, (B, S, F), dtype=jnp.float32)
    out = jax.block_until_ready(global_max_pooling(x))
    assert out.shape == (B, F), out.shape
    assert out.dtype == x.dtype
    assert jnp.array_equal(out, jnp.max(x, axis=1)), "case 1 mismatch"

    # Case 2: sequence-tiled path with a partial (masked) last tile.
    x2 = jax.random.normal(jax.random.PRNGKey(1), (4, 20, 128), dtype=jnp.float32)
    out2 = jax.block_until_ready(global_max_pooling(x2, target_tile_bytes=4096))
    assert jnp.array_equal(out2, jnp.max(x2, axis=1)), "case 2 mismatch"

    # Case 3: bf16, lane-dense, feature-split (two parallel feature blocks).
    x3 = jax.random.normal(jax.random.PRNGKey(2), (3, 16, 256), dtype=jnp.bfloat16)
    out3 = jax.block_until_ready(global_max_pooling(x3))
    assert out3.dtype == jnp.bfloat16
    assert jnp.array_equal(out3, jnp.max(x3, axis=1)), "case 3 mismatch"

    # Case 4: B not a multiple of tb (partial batch block writeback masking)
    # plus multiple sequence tiles with no residual.
    x4 = jax.random.normal(jax.random.PRNGKey(3), (20, 16, 128), dtype=jnp.float32)
    out4 = jax.block_until_ready(global_max_pooling(x4, target_tile_bytes=4096))
    assert jnp.array_equal(out4, jnp.max(x4, axis=1)), "case 4 mismatch"

    # Case 5: non-foldable narrow F (padded-lane budgeting fallback path).
    x5 = jax.random.normal(jax.random.PRNGKey(4), (2, 10, 96), dtype=jnp.float32)
    out5 = jax.block_until_ready(global_max_pooling(x5))
    assert jnp.array_equal(out5, jnp.max(x5, axis=1)), "case 5 mismatch"

    # Case 6: larger shape exercising >=2 pipelined sequence steps and the
    # feature-split parallel axis with default (8 MiB) tiles.
    x6 = jax.random.normal(jax.random.PRNGKey(5), (8, 2048, 256), dtype=jnp.float32)
    out6 = jax.block_until_ready(global_max_pooling(x6))
    assert jnp.array_equal(out6, jnp.max(x6, axis=1)), "case 6 mismatch"

    print("KERNEL_OK")
</pallas_src>

<mosaic_0001>
module attributes {stable_mosaic.version = 11 : i64} {
  func.func @_global_max_pool_kernel(%arg0: i32, %arg1: i32, %arg2: i32, %arg3: memref<2x2x128xf32, #tpu.memory_space<vmem>>, %arg4: memref<2x128xf32, #tpu.memory_space<vmem>>) attributes {dimension_semantics = [#tpu.dimension_semantics<parallel>, #tpu.dimension_semantics<parallel>, #tpu.dimension_semantics<arbitrary>], iteration_bounds = array<i64: 1, 1, 1>, scalar_prefetch = 0 : i64, scratch_operands = 0 : i64, tpu.core_type = #tpu.core_type<tc>, window_params = [{transform_indices = @transform_0, window_bounds = array<i64: 2, 2, 128>}, {transform_indices = @transform_1, window_bounds = array<i64: 2, 128>}]} {
    %c0_i32 = arith.constant 0 : i32
    %0 = arith.cmpi eq, %arg2, %c0_i32 : i32
    %1 = arith.extui %0 : i1 to i32
    %c0_i32_0 = arith.constant 0 : i32
    %2 = arith.cmpi ne, %1, %c0_i32_0 : i32
    scf.if %2 {
      %cst_7 = arith.constant 0xFF800000 : f32
      %8 = vector.broadcast %cst_7 : f32 to vector<2x128xf32>
      %c0_8 = arith.constant 0 : index
      %c0_9 = arith.constant 0 : index
      %9 = vector.load %arg4[%c0_8, %c0_9] : memref<2x128xf32, #tpu.memory_space<vmem>>, vector<2x128xf32>
      tpu.vector_store %arg4[%c0_8, %c0_9], %8 {strides = array<i32>} : memref<2x128xf32, #tpu.memory_space<vmem>>, vector<2x128xf32>,
    } else {
    }
    %c0 = arith.constant 0 : index
    %c0_1 = arith.constant 0 : index
    %c0_2 = arith.constant 0 : index
    %3 = vector.load %arg3[%c0, %c0_1, %c0_2] : memref<2x2x128xf32, #tpu.memory_space<vmem>>, vector<2x2x128xf32>
    %c0_3 = arith.constant 0 : index
    %c0_4 = arith.constant 0 : index
    %4 = vector.load %arg4[%c0_3, %c0_4] : memref<2x128xf32, #tpu.memory_space<vmem>>, vector<2x128xf32>
    %cst = arith.constant dense<0xFF800000> : vector<2x128xf32>
    %5 = vector.multi_reduction <maximumf>, %3, %cst [1] : vector<2x2x128xf32> to vector<2x128xf32>
    %6 = arith.maximumf %4, %5 : vector<2x128xf32>
    %c0_5 = arith.constant 0 : index
    %c0_6 = arith.constant 0 : index
    %7 = vector.load %arg4[%c0_5, %c0_6] : memref<2x128xf32, #tpu.memory_space<vmem>>, vector<2x128xf32>
    tpu.vector_store %arg4[%c0_5, %c0_6], %6 {strides = array<i32>} : memref<2x128xf32, #tpu.memory_space<vmem>>, vector<2x128xf32>,
    return
  }
  func.func @transform_0(%arg0: i32, %arg1: i32, %arg2: i32) -> (i32, i32, i32) {
    %c0_i32 = arith.constant 0 : i32
    return %arg0, %arg2, %arg1 : i32, i32, i32
  }
  func.func @transform_1(%arg0: i32, %arg1: i32, %arg2: i32) -> (i32, i32) {
    %c0_i32 = arith.constant 0 : i32
    return %arg0, %arg1 : i32, i32
  }
}

</mosaic_0001>

<llo_original>
// kernel: tpu_custom_call.1
$region0: #{tpu_custom_call.1}
  #allocation0 [shape = 'u32[]', space=smem, size = 0x4, offset = 0x4, fixed_abs, tag = 'smem constant byte address 0x4 - core index']
  #allocation1 [shape = 'u32[144,128]{1,0:T(1,128)}', space=vmem, size = 0x12000, scoped, tag = 'internal scratch']
  %s0 = inlined_call_operand.hbm [shape: f32[2,2,128], index: 0, kind: input, shape index: {}]
  %s1 = inlined_call_operand.hbm [shape: f32[2,128], index: 1, kind: output, shape index: {}]
  %s2 = sld [smem:[#allocation0]]
  $region22: #{tpu_custom_call.1} parent=0
    _
  %s4 = ssub.s32 1, %s2
  %s5 = scalar_select 0, %s4, %s2
  $region1: #{tpu_custom_call.1} parent=0
    #allocation2 [shape = 'u8[2048]{0}', space=vmem, size = 0x800, scoped, tag = 'input window, operand 0, single buffered']
    #allocation3 [shape = 's32[1]{0}', space=sflag, size = 0x4, scoped, tag = 'scoped memory for tpu_custom_call.1']
    #allocation4 [shape = 's32[1]{0}', space=sflag, size = 0x4, scoped, tag = 'scoped memory for tpu_custom_call.1']
    #allocation5 [shape = 'u8[1024]{0}', space=vmem, size = 0x400, scoped, tag = 'output window, operand 0, single buffered']
    %6 = vsyncpa [#allocation3], 0
    %7 = vsyncpa [#allocation4], 0
    // Predicated region
    $region2: #{tpu_custom_call.1} parent=1 // pred_check
      _
    $region3: #{tpu_custom_call.1} parent=1 // pred_check_branch
      %9 = sbr.rel (0) target = $region5
    $region4: #{tpu_custom_call.1} parent=1 // pred_region
      %s11 = ssub.s32 64, 64
      %12 = vsyncadd [#allocation3], %s11
      %s13 = sshll.u32 [#allocation2], 4
      %s14 = int_to_ptr.vmem [resolvable:$true] %s13
      %19 = dma.hbm_to_vmem [thread:$0]  %s0, 64, %s14, [#allocation3], 32, 32, 2
    $region5: #{tpu_custom_call.1} parent=1 // pred_fallthru
      _
    // Predicated region
    $region6: #{tpu_custom_call.1} parent=1 // pred_check
      _
    $region7: #{tpu_custom_call.1} parent=1 // pred_check_branch
      %21 = sbr.rel (0) target = $region9
    $region8: #{tpu_custom_call.1} parent=1 // pred_region
      %22 = dma.done [#allocation3], 64
    $region9: #{tpu_custom_call.1} parent=1 // pred_fallthru
      _
    %p23 = scmp.eq.s32.totalorder 0, 0
    // Predicated region
    $region10: #{tpu_custom_call.1} parent=1 // pred_check
      %p24 = pneg %p23
    $region11: #{tpu_custom_call.1} parent=1 // pred_check_branch
      %26 = sbr.rel (%p24) target = $region13
    $region12: #{tpu_custom_call.1} parent=1 // pred_region
      %27 = vst [vmem:[#allocation5] sm:$0x3] -inf
    $region13: #{tpu_custom_call.1} parent=1 // pred_fallthru
      _
    %v28 = vld [vmem:[#allocation2] sm:$0x3]
    %v29 = vld [vmem:[#allocation2 + $0x2] sm:$0x3]
    %v30 = vld [vmem:[#allocation5] sm:$0x3]
    %vm31 = vcmask 1041408
    %v32 = vsel %vm31, %v28, -inf
    %v33 = vrot.slane %v32, 4
    %v34 = vmax.f32 %v32, %v33
    %v35 = vrot.slane %v34, 2
    %v36 = vmax.f32 %v34, %v35
    %v37 = vrot.slane %v36, 1
    %v38 = vmax.f32 %v36, %v37
    %v39 = vsel %vm31, %v29, -inf
    %v40 = vrot.slane %v39, 4
    %v41 = vmax.f32 %v39, %v40
    %v42 = vrot.slane %v41, 2
    %v43 = vmax.f32 %v41, %v42
    %v44 = vrot.slane %v43, 1
    %v45 = vmax.f32 %v43, %v44
    %vm48 = vcmask 1041409
    %v49 = vsel %vm48, %v45, %v38
    %v51 = vmax.f32 %v30, %v49
    %52 = vst [vmem:[#allocation5] sm:$0x3] %v51
    // Predicated region
    $region14: #{tpu_custom_call.1} parent=1 // pred_check
      _
    $region15: #{tpu_custom_call.1} parent=1 // pred_check_branch
      %54 = sbr.rel (0) target = $region17
    $region16: #{tpu_custom_call.1} parent=1 // pred_region
      %s56 = ssub.s32 32, 32
      %57 = vsyncadd [#allocation4], %s56
      %s59 = sshll.u32 [#allocation5], 4
      %s60 = int_to_ptr.vmem [resolvable:$true] %s59
      %62 = dma.vmem_to_hbm [thread:$0]  %s60, 32, %s1, [#allocation4]
    $region17: #{tpu_custom_call.1} parent=1 // pred_fallthru
      _
    // Predicated region
    $region18: #{tpu_custom_call.1} parent=1 // pred_check
      _
    $region19: #{tpu_custom_call.1} parent=1 // pred_check_branch
      %64 = sbr.rel (0) target = $region21
    $region20: #{tpu_custom_call.1} parent=1 // pred_region
      %65 = dma.done [#allocation4], 32
    $region21: #{tpu_custom_call.1} parent=1 // pred_fallthru
      _
    %66 = vsyncpa [#allocation3], 1
    %67 = vsyncpa [#allocation4], 1

</llo_original>
